<compile_context>
chip_gen: v5e
topology: v5e:2x2
jax: 0.10.0
libtpu: 0.0.40
codegen_flags: <defaults>
</compile_context>

<pallas_src>
from concurrent.futures import ThreadPoolExecutor

import numpy as np
import jax
import jax.numpy as jnp
from jax.experimental import pallas as pl
from jax.experimental.pallas import tpu as pltpu
from scipy.optimize import linear_sum_assignment

ALPHA = 0.25
GAMMA = 2.0   # == 2 -> implemented as an explicit square inside the kernel
EPS = 1e-8


def _round_up(x, m):
    return ((x + m - 1) // m) * m


def _make_cost_kernel(cost_giou: float, approx_recip: bool):
    cg = float(cost_giou)

    def cost_kernel(logits_ref, onehot_ref, pslab_ref, tslab_ref, c_ref):
        # ---- focal classification cost on [TILE_Q, C]; gather + cost_class weighting
        #      both handled by one MXU matmul against the (pre-scaled) one-hot.
        logits = logits_ref[...]                      # [TILE_Q, C]
        p = jax.nn.sigmoid(logits)
        q = 1.0 - p
        # gamma == 2.0: explicit squares instead of float pow (saves EUP exp+log)
        neg = (1.0 - ALPHA) * (p * p) * (-jnp.log(q + EPS))
        pos = ALPHA * (q * q) * (-jnp.log(p + EPS))
        cls_cost = jnp.dot(pos - neg, onehot_ref[...],
                           preferred_element_type=jnp.float32)   # [TILE_Q, T_pad]

        ps = pslab_ref[...]   # [TILE_Q, 16]: cb*cx,cb*cy,cb*w,cb*h, x0,y0,x1,y1, area, 0..
        ts = tslab_ref[...]   # [16, T_pad]:  same row layout

        # ---- L1 bbox cost (torch.cdist p=1); cost_bbox already folded into the coords
        l1 = (jnp.abs(ps[:, 0:1] - ts[0:1, :]) +
              jnp.abs(ps[:, 1:2] - ts[1:2, :]) +
              jnp.abs(ps[:, 2:3] - ts[2:3, :]) +
              jnp.abs(ps[:, 3:4] - ts[3:4, :]))

        # ---- GIoU cost from precomputed xyxy + areas (single reciprocal per element)
        ox0, oy0, ox1, oy1 = ps[:, 4:5], ps[:, 5:6], ps[:, 6:7], ps[:, 7:8]
        area_o = ps[:, 8:9]                            # [TILE_Q, 1]
        tx0, ty0, tx1, ty1 = ts[4:5, :], ts[5:6, :], ts[6:7, :], ts[7:8, :]
        area_t = ts[8:9, :]                            # [1, T_pad]

        iw = jnp.maximum(jnp.minimum(ox1, tx1) - jnp.maximum(ox0, tx0), 0.0)
        ih = jnp.maximum(jnp.minimum(oy1, ty1) - jnp.maximum(oy0, ty0), 0.0)
        inter = iw * ih                                # [TILE_Q, T_pad]
        union = area_o + area_t - inter
        # x1>=x0 / y1>=y0 always holds for cxcywh->xyxy with non-negative w,h, so the
        # enclosing extents are non-negative without an extra clamp (2 VALU ops saved).
        ew = jnp.maximum(ox1, tx1) - jnp.minimum(ox0, tx0)
        eh = jnp.maximum(oy1, ty1) - jnp.minimum(oy0, ty0)
        encl = ew * eh

        # giou = inter/union - (encl-union)/encl == (inter*encl + union^2)/(union*encl) - 1
        # -> -cost_giou * giou == cg - cg*(inter*encl + union^2) * recip(union*encl)
        denom = jnp.maximum(union * encl, 1e-12)       # guard degenerate zero-area boxes
        num_cg = cg * (inter * encl + union * union)
        if approx_recip:
            giou_term = cg - num_cg * pl.reciprocal(denom, approx=True)
        else:
            giou_term = cg - num_cg / denom            # exact path (validation only)

        c_ref[...] = (l1 + cls_cost + giou_term).astype(c_ref.dtype)

    return cost_kernel


def compute_cost_blocks(pred_logits, pred_boxes, targets,
                        cost_class=1.0, cost_bbox=1.0, cost_giou=1.0,
                        approx_recip=True):
    """Block-diagonal cost matrix.

    Returns (C_blocks, sizes) where C_blocks has shape [bs, Q_pad, T_pad] and only
    C_blocks[b, :num_queries, :sizes[b]] is meaningful (padded rows/cols are finite
    garbage and are dropped by the caller before the Hungarian solve).
    """
    bs, num_queries, num_classes = pred_logits.shape
    sizes = [int(t["boxes"].shape[0]) for t in targets]
    assert cost_bbox >= 0, "folding cost_bbox into |.| assumes a non-negative weight"

    # lane-dense T (multiple of 128) -> unmasked vector stores; buckets to few shapes.
    t_pad = max(_round_up(max(sizes) if sizes else 1, 128), 128)

    # One full-Q tile per batch element (grid (bs, 1)) for typical DETR query counts.
    q8 = _round_up(num_queries, 8)
    tile_q = q8 if q8 <= 1024 else 512
    q_pad = _round_up(num_queries, tile_q)

    cb = float(cost_bbox)

    # --- predictions: padded logits + packed box slab (cb*cxcywh, xyxy, area) -------
    logits = jnp.pad(pred_logits.astype(jnp.float32),
                     ((0, 0), (0, q_pad - num_queries), (0, 0)))
    pb = pred_boxes.astype(jnp.float32)
    pcx, pcy, pw, ph = pb[..., 0], pb[..., 1], pb[..., 2], pb[..., 3]
    px0, py0 = pcx - 0.5 * pw, pcy - 0.5 * ph
    px1, py1 = pcx + 0.5 * pw, pcy + 0.5 * ph
    parea = (px1 - px0) * (py1 - py0)
    pcore = jnp.stack([cb * pcx, cb * pcy, cb * pw, cb * ph,
                       px0, py0, px1, py1, parea], axis=-1)          # [bs, Q, 9]
    pslab = jnp.pad(pcore, ((0, 0), (0, q_pad - num_queries), (0, 16 - 9)))

    # --- targets: single padded host pad + one batched device preprocessing pass ----
    labels_pad = np.full((bs, t_pad), num_classes, np.int32)  # OOR idx -> zero one-hot
    boxes_pad = np.zeros((bs, t_pad, 4), np.float32)
    for b, t in enumerate(targets):
        s = sizes[b]
        if s > 0:
            labels_pad[b, :s] = np.asarray(t["labels"], dtype=np.int32)
            boxes_pad[b, :s, :] = np.asarray(t["boxes"], dtype=np.float32)
    labels_d = jnp.asarray(labels_pad)
    boxes_d = jnp.asarray(boxes_pad)

    # fold cost_class into the matmul RHS (linear -> exact)
    onehot = jax.nn.one_hot(labels_d, num_classes, dtype=jnp.float32, axis=1)
    onehot = onehot * float(cost_class)                               # [bs, C, T_pad]
    # TODO(synk): for very large num_classes * T_pad, build the one-hot inside the
    # kernel from a [1, T_pad] label block (iota compare) to avoid the [C,T_pad] DMA.

    tcx, tcy, tw, th = boxes_d[..., 0], boxes_d[..., 1], boxes_d[..., 2], boxes_d[..., 3]
    tx0, ty0 = tcx - 0.5 * tw, tcy - 0.5 * th
    tx1, ty1 = tcx + 0.5 * tw, tcy + 0.5 * th
    tarea = (tx1 - tx0) * (ty1 - ty0)
    tcore = jnp.stack([cb * tcx, cb * tcy, cb * tw, cb * th,
                       tx0, ty0, tx1, ty1, tarea], axis=1)            # [bs, 9, T_pad]
    tslab = jnp.pad(tcore, ((0, 0), (0, 16 - 9), (0, 0)))             # [bs, 16, T_pad]

    kernel = _make_cost_kernel(float(cost_giou), approx_recip)
    c_blocks = pl.pallas_call(
        kernel,
        out_shape=jax.ShapeDtypeStruct((bs, q_pad, t_pad), jnp.float32),
        grid_spec=pltpu.PrefetchScalarGridSpec(
            num_scalar_prefetch=0,
            grid=(bs, q_pad // tile_q),
            in_specs=[
                pl.BlockSpec((None, tile_q, num_classes), lambda b, qi: (b, qi, 0)),
                pl.BlockSpec((None, num_classes, t_pad), lambda b, qi: (b, 0, 0)),
                pl.BlockSpec((None, tile_q, 16), lambda b, qi: (b, qi, 0)),
                pl.BlockSpec((None, 16, t_pad), lambda b, qi: (b, 0, 0)),
            ],
            out_specs=pl.BlockSpec((None, tile_q, t_pad), lambda b, qi: (b, qi, 0)),
        ),
        compiler_params=pltpu.CompilerParams(
            # bs is the axis the v7x megacore shards; the qi axis is usually extent 1.
            dimension_semantics=("parallel", "arbitrary"),
            vmem_limit_bytes=32 * 1024 * 1024,
        ),
    )(logits, onehot, pslab, tslab)
    return c_blocks, sizes


def hungarian_matcher(outputs, targets, cost_class=1.0, cost_bbox=1.0, cost_giou=1.0):
    """JAX/Pallas port of HungarianMatcher.forward; returns list of (index_i, index_j)."""
    pred_logits = outputs["pred_logits"]
    pred_boxes = outputs["pred_boxes"]
    num_queries = pred_logits.shape[1]

    c_blocks, sizes = compute_cost_blocks(pred_logits, pred_boxes, targets,
                                          cost_class, cost_bbox, cost_giou,
                                          approx_recip=True)
    if not sizes:
        return []

    # One D2H transfer of the whole block-diagonal tensor (started async), then the
    # sequential-per-block scipy solves run in a thread pool.
    if hasattr(c_blocks, "copy_to_host_async"):
        c_blocks.copy_to_host_async()
    c_host = np.asarray(c_blocks)

    # TODO(synk): linear_sum_assignment (Hungarian) is an inherently sequential
    # host-side algorithm with no clean Pallas equivalent; solved with scipy here.
    def _solve(b):
        i, j = linear_sum_assignment(c_host[b, :num_queries, :sizes[b]])
        return np.asarray(i, dtype=np.int64), np.asarray(j, dtype=np.int64)

    with ThreadPoolExecutor(max_workers=max(1, min(len(sizes), 8))) as ex:
        indices = list(ex.map(_solve, range(len(sizes))))
    return indices


# ---------------------------------------------------------------------------
# Pure-JAX reference (for validation of the Pallas cost blocks).
# ---------------------------------------------------------------------------
def _ref_cost_matrix(pred_logits, pred_boxes, tgt_ids, tgt_bbox,
                     cost_class=1.0, cost_bbox=1.0, cost_giou=1.0):
    bs, num_queries, _ = pred_logits.shape
    out_prob = jax.nn.sigmoid(pred_logits.reshape(bs * num_queries, -1))
    out_bbox = pred_boxes.reshape(bs * num_queries, 4)
    neg = (1 - ALPHA) * out_prob ** GAMMA * -jnp.log(1 - out_prob + EPS)
    pos = ALPHA * (1 - out_prob) ** GAMMA * -jnp.log(out_prob + EPS)
    cls_cost = pos[:, tgt_ids] - neg[:, tgt_ids]
    l1 = jnp.abs(out_bbox[:, None, :] - tgt_bbox[None, :, :]).sum(-1)

    def to_xyxy(b):
        cx, cy, w, h = b[..., 0], b[..., 1], b[..., 2], b[..., 3]
        return jnp.stack([cx - 0.5 * w, cy - 0.5 * h, cx + 0.5 * w, cy + 0.5 * h], -1)

    b1 = to_xyxy(out_bbox)
    b2 = to_xyxy(tgt_bbox)
    a1 = (b1[:, 2] - b1[:, 0]) * (b1[:, 3] - b1[:, 1])
    a2 = (b2[:, 2] - b2[:, 0]) * (b2[:, 3] - b2[:, 1])
    lt = jnp.maximum(b1[:, None, :2], b2[None, :, :2])
    rb = jnp.minimum(b1[:, None, 2:], b2[None, :, 2:])
    wh = jnp.clip(rb - lt, 0)
    inter = wh[..., 0] * wh[..., 1]
    union = a1[:, None] + a2[None, :] - inter
    iou = inter / union
    elt = jnp.minimum(b1[:, None, :2], b2[None, :, :2])
    erb = jnp.maximum(b1[:, None, 2:], b2[None, :, 2:])
    ewh = jnp.clip(erb - elt, 0)
    encl = ewh[..., 0] * ewh[..., 1]
    giou = iou - (encl - union) / encl
    C = cost_bbox * l1 + cost_class * cls_cost + cost_giou * (-giou)
    return C.reshape(bs, num_queries, -1)


if __name__ == "__main__":
    key = jax.random.PRNGKey(0)
    bs, num_queries, num_classes = 2, 8, 16
    sizes = [3, 5]  # targets per batch element

    k1, k2, k3, k4 = jax.random.split(key, 4)
    pred_logits = jax.random.normal(k1, (bs, num_queries, num_classes), jnp.float32)

    def rand_boxes(k, n):
        kc, ks = jax.random.split(k)
        centers = jax.random.uniform(kc, (n, 2), minval=0.2, maxval=0.8)
        wh = jax.random.uniform(ks, (n, 2), minval=0.05, maxval=0.3)
        return jnp.concatenate([centers, wh], axis=-1).astype(jnp.float32)

    pred_boxes = rand_boxes(k2, bs * num_queries).reshape(bs, num_queries, 4)

    targets = []
    tk = k3
    for n in sizes:
        tk, kl, kb = jax.random.split(tk, 3)
        targets.append({
            "labels": jax.random.randint(kl, (n,), 0, num_classes, dtype=jnp.int32),
            "boxes": rand_boxes(kb, n),
        })

    outputs = {"pred_logits": pred_logits, "pred_boxes": pred_boxes}

    # full matcher (fast approx-recip kernel + scipy Hungarian in a thread pool)
    indices = hungarian_matcher(outputs, targets)

    # --- validation: exact-divide kernel vs pure-JAX reference at tight tolerance ---
    c_exact, _ = compute_cost_blocks(pred_logits, pred_boxes, targets,
                                     approx_recip=False)
    c_exact = jax.block_until_ready(c_exact)

    tgt_ids = jnp.concatenate([t["labels"] for t in targets])
    tgt_bbox = jnp.concatenate([t["boxes"] for t in targets])
    C_ref = _ref_cost_matrix(pred_logits, pred_boxes, tgt_ids, tgt_bbox)

    offs = np.concatenate([[0], np.cumsum(sizes)])
    for b, s in enumerate(sizes):
        np.testing.assert_allclose(
            np.asarray(c_exact[b, :num_queries, :s]),
            np.asarray(C_ref[b, :, offs[b]:offs[b] + s]),
            rtol=1e-5, atol=1e-5)

    # --- fast path (approx reciprocal) vs exact path at loose absolute tolerance ----
    c_fast, _ = compute_cost_blocks(pred_logits, pred_boxes, targets,
                                    approx_recip=True)
    c_fast = jax.block_until_ready(c_fast)
    for b, s in enumerate(sizes):
        np.testing.assert_allclose(
            np.asarray(c_fast[b, :num_queries, :s]),
            np.asarray(c_exact[b, :num_queries, :s]),
            rtol=0.0, atol=2e-2)

    # sanity: per-batch assignment sizes are min(num_queries, num_targets)
    for (i, j), n in zip(indices, sizes):
        assert len(i) == len(j) == min(num_queries, n)

    print("KERNEL_OK")
</pallas_src>

<mosaic_0001>
module attributes {stable_mosaic.version = 11 : i64} {
  func.func @cost_kernel(%arg0: i32, %arg1: i32, %arg2: memref<1x8x16xf32, #tpu.memory_space<vmem>>, %arg3: memref<1x16x128xf32, #tpu.memory_space<vmem>>, %arg4: memref<1x8x16xf32, #tpu.memory_space<vmem>>, %arg5: memref<1x16x128xf32, #tpu.memory_space<vmem>>, %arg6: memref<1x8x128xf32, #tpu.memory_space<vmem>>) attributes {dimension_semantics = [#tpu.dimension_semantics<parallel>, #tpu.dimension_semantics<arbitrary>], iteration_bounds = array<i64: 2, 1>, scalar_prefetch = 0 : i64, scratch_operands = 0 : i64, tpu.core_type = #tpu.core_type<tc>, window_params = [{transform_indices = @transform_0, window_bounds = array<i64: 1, 8, 16>}, {transform_indices = @transform_1, window_bounds = array<i64: 1, 16, 128>}, {transform_indices = @transform_2, window_bounds = array<i64: 1, 8, 16>}, {transform_indices = @transform_3, window_bounds = array<i64: 1, 16, 128>}, {transform_indices = @transform_4, window_bounds = array<i64: 1, 8, 128>}]} {
    %c0 = arith.constant 0 : index
    %c0_0 = arith.constant 0 : index
    %c0_1 = arith.constant 0 : index
    %0 = vector.load %arg2[%c0, %c0_0, %c0_1] : memref<1x8x16xf32, #tpu.memory_space<vmem>>, vector<1x8x16xf32>
    %1 = vector.shape_cast %0 : vector<1x8x16xf32> to vector<8x16xf32>
    %2 = arith.negf %1 : vector<8x16xf32>
    %3 = math.exp %2 : vector<8x16xf32>
    %cst = arith.constant 1.000000e+00 : f32
    %4 = vector.broadcast %cst : f32 to vector<8x16xf32>
    %5 = arith.addf %4, %3 : vector<8x16xf32>
    %6 = arith.divf %4, %5 : vector<8x16xf32>
    %cst_2 = arith.constant 1.000000e+00 : f32
    %7 = vector.broadcast %cst_2 : f32 to vector<8x16xf32>
    %8 = arith.subf %7, %6 : vector<8x16xf32>
    %9 = arith.mulf %6, %6 : vector<8x16xf32>
    %cst_3 = arith.constant 7.500000e-01 : f32
    %10 = vector.broadcast %cst_3 : f32 to vector<8x16xf32>
    %11 = arith.mulf %10, %9 : vector<8x16xf32>
    %cst_4 = arith.constant 9.99999993E-9 : f32
    %12 = vector.broadcast %cst_4 : f32 to vector<8x16xf32>
    %13 = arith.addf %8, %12 : vector<8x16xf32>
    %14 = math.log %13 : vector<8x16xf32>
    %cst_5 = arith.constant 0.000000e+00 : f32
    %15 = vector.broadcast %cst_5 : f32 to vector<8x16xf32>
    %16 = arith.subf %15, %14 : vector<8x16xf32>
    %17 = arith.mulf %11, %16 : vector<8x16xf32>
    %18 = arith.mulf %8, %8 : vector<8x16xf32>
    %cst_6 = arith.constant 2.500000e-01 : f32
    %19 = vector.broadcast %cst_6 : f32 to vector<8x16xf32>
    %20 = arith.mulf %19, %18 : vector<8x16xf32>
    %cst_7 = arith.constant 9.99999993E-9 : f32
    %21 = vector.broadcast %cst_7 : f32 to vector<8x16xf32>
    %22 = arith.addf %6, %21 : vector<8x16xf32>
    %23 = math.log %22 : vector<8x16xf32>
    %cst_8 = arith.constant 0.000000e+00 : f32
    %24 = vector.broadcast %cst_8 : f32 to vector<8x16xf32>
    %25 = arith.subf %24, %23 : vector<8x16xf32>
    %26 = arith.mulf %20, %25 : vector<8x16xf32>
    %27 = arith.subf %26, %17 : vector<8x16xf32>
    %c0_9 = arith.constant 0 : index
    %c0_10 = arith.constant 0 : index
    %c0_11 = arith.constant 0 : index
    %28 = vector.load %arg3[%c0_9, %c0_10, %c0_11] : memref<1x16x128xf32, #tpu.memory_space<vmem>>, vector<1x16x128xf32>
    %29 = vector.shape_cast %28 : vector<1x16x128xf32> to vector<16x128xf32>
    %cst_12 = arith.constant dense<0.000000e+00> : vector<8x128xf32>
    %30 = tpu.matmul %27, %29, %cst_12 {dimension_numbers = #tpu.dot_dimension_numbers<[1], [0], [0], [1], [0, 0, 1, 1], [], []>} : vector<8x16xf32>, vector<16x128xf32>, vector<8x128xf32> -> vector<8x128xf32>
    %c0_13 = arith.constant 0 : index
    %c0_14 = arith.constant 0 : index
    %c0_15 = arith.constant 0 : index
    %31 = vector.load %arg4[%c0_13, %c0_14, %c0_15] : memref<1x8x16xf32, #tpu.memory_space<vmem>>, vector<1x8x16xf32>
    %32 = vector.shape_cast %31 : vector<1x8x16xf32> to vector<8x16xf32>
    %c0_16 = arith.constant 0 : index
    %c0_17 = arith.constant 0 : index
    %c0_18 = arith.constant 0 : index
    %33 = vector.load %arg5[%c0_16, %c0_17, %c0_18] : memref<1x16x128xf32, #tpu.memory_space<vmem>>, vector<1x16x128xf32>
    %34 = vector.shape_cast %33 : vector<1x16x128xf32> to vector<16x128xf32>
    %35 = vector.extract_strided_slice %32 {offsets = [0, 0], sizes = [8, 1], strides = [1, 1]} : vector<8x16xf32> to vector<8x1xf32>
    %36 = vector.extract_strided_slice %34 {offsets = [0, 0], sizes = [1, 128], strides = [1, 1]} : vector<16x128xf32> to vector<1x128xf32>
    %37 = vector.broadcast %35 : vector<8x1xf32> to vector<8x128xf32>
    %38 = vector.broadcast %36 : vector<1x128xf32> to vector<8x128xf32>
    %39 = arith.subf %37, %38 : vector<8x128xf32>
    %40 = math.absf %39 : vector<8x128xf32>
    %41 = vector.extract_strided_slice %32 {offsets = [0, 1], sizes = [8, 1], strides = [1, 1]} : vector<8x16xf32> to vector<8x1xf32>
    %42 = vector.extract_strided_slice %34 {offsets = [1, 0], sizes = [1, 128], strides = [1, 1]} : vector<16x128xf32> to vector<1x128xf32>
    %43 = vector.broadcast %41 : vector<8x1xf32> to vector<8x128xf32>
    %44 = vector.broadcast %42 : vector<1x128xf32> to vector<8x128xf32>
    %45 = arith.subf %43, %44 : vector<8x128xf32>
    %46 = math.absf %45 : vector<8x128xf32>
    %47 = arith.addf %40, %46 : vector<8x128xf32>
    %48 = vector.extract_strided_slice %32 {offsets = [0, 2], sizes = [8, 1], strides = [1, 1]} : vector<8x16xf32> to vector<8x1xf32>
    %49 = vector.extract_strided_slice %34 {offsets = [2, 0], sizes = [1, 128], strides = [1, 1]} : vector<16x128xf32> to vector<1x128xf32>
    %50 = vector.broadcast %48 : vector<8x1xf32> to vector<8x128xf32>
    %51 = vector.broadcast %49 : vector<1x128xf32> to vector<8x128xf32>
    %52 = arith.subf %50, %51 : vector<8x128xf32>
    %53 = math.absf %52 : vector<8x128xf32>
    %54 = arith.addf %47, %53 : vector<8x128xf32>
    %55 = vector.extract_strided_slice %32 {offsets = [0, 3], sizes = [8, 1], strides = [1, 1]} : vector<8x16xf32> to vector<8x1xf32>
    %56 = vector.extract_strided_slice %34 {offsets = [3, 0], sizes = [1, 128], strides = [1, 1]} : vector<16x128xf32> to vector<1x128xf32>
    %57 = vector.broadcast %55 : vector<8x1xf32> to vector<8x128xf32>
    %58 = vector.broadcast %56 : vector<1x128xf32> to vector<8x128xf32>
    %59 = arith.subf %57, %58 : vector<8x128xf32>
    %60 = math.absf %59 : vector<8x128xf32>
    %61 = arith.addf %54, %60 : vector<8x128xf32>
    %62 = vector.extract_strided_slice %32 {offsets = [0, 4], sizes = [8, 1], strides = [1, 1]} : vector<8x16xf32> to vector<8x1xf32>
    %63 = vector.extract_strided_slice %32 {offsets = [0, 5], sizes = [8, 1], strides = [1, 1]} : vector<8x16xf32> to vector<8x1xf32>
    %64 = vector.extract_strided_slice %32 {offsets = [0, 6], sizes = [8, 1], strides = [1, 1]} : vector<8x16xf32> to vector<8x1xf32>
    %65 = vector.extract_strided_slice %32 {offsets = [0, 7], sizes = [8, 1], strides = [1, 1]} : vector<8x16xf32> to vector<8x1xf32>
    %66 = vector.extract_strided_slice %32 {offsets = [0, 8], sizes = [8, 1], strides = [1, 1]} : vector<8x16xf32> to vector<8x1xf32>
    %67 = vector.extract_strided_slice %34 {offsets = [4, 0], sizes = [1, 128], strides = [1, 1]} : vector<16x128xf32> to vector<1x128xf32>
    %68 = vector.extract_strided_slice %34 {offsets = [5, 0], sizes = [1, 128], strides = [1, 1]} : vector<16x128xf32> to vector<1x128xf32>
    %69 = vector.extract_strided_slice %34 {offsets = [6, 0], sizes = [1, 128], strides = [1, 1]} : vector<16x128xf32> to vector<1x128xf32>
    %70 = vector.extract_strided_slice %34 {offsets = [7, 0], sizes = [1, 128], strides = [1, 1]} : vector<16x128xf32> to vector<1x128xf32>
    %71 = vector.extract_strided_slice %34 {offsets = [8, 0], sizes = [1, 128], strides = [1, 1]} : vector<16x128xf32> to vector<1x128xf32>
    %72 = vector.broadcast %64 : vector<8x1xf32> to vector<8x128xf32>
    %73 = vector.broadcast %69 : vector<1x128xf32> to vector<8x128xf32>
    %74 = arith.minimumf %72, %73 : vector<8x128xf32>
    %75 = vector.broadcast %62 : vector<8x1xf32> to vector<8x128xf32>
    %76 = vector.broadcast %67 : vector<1x128xf32> to vector<8x128xf32>
    %77 = arith.maximumf %75, %76 : vector<8x128xf32>
    %78 = arith.subf %74, %77 : vector<8x128xf32>
    %cst_19 = arith.constant 0.000000e+00 : f32
    %79 = vector.broadcast %cst_19 : f32 to vector<8x128xf32>
    %80 = arith.maximumf %78, %79 : vector<8x128xf32>
    %81 = vector.broadcast %65 : vector<8x1xf32> to vector<8x128xf32>
    %82 = vector.broadcast %70 : vector<1x128xf32> to vector<8x128xf32>
    %83 = arith.minimumf %81, %82 : vector<8x128xf32>
    %84 = vector.broadcast %63 : vector<8x1xf32> to vector<8x128xf32>
    %85 = vector.broadcast %68 : vector<1x128xf32> to vector<8x128xf32>
    %86 = arith.maximumf %84, %85 : vector<8x128xf32>
    %87 = arith.subf %83, %86 : vector<8x128xf32>
    %cst_20 = arith.constant 0.000000e+00 : f32
    %88 = vector.broadcast %cst_20 : f32 to vector<8x128xf32>
    %89 = arith.maximumf %87, %88 : vector<8x128xf32>
    %90 = arith.mulf %80, %89 : vector<8x128xf32>
    %91 = vector.broadcast %66 : vector<8x1xf32> to vector<8x128xf32>
    %92 = vector.broadcast %71 : vector<1x128xf32> to vector<8x128xf32>
    %93 = arith.addf %91, %92 : vector<8x128xf32>
    %94 = arith.subf %93, %90 : vector<8x128xf32>
    %95 = vector.broadcast %64 : vector<8x1xf32> to vector<8x128xf32>
    %96 = vector.broadcast %69 : vector<1x128xf32> to vector<8x128xf32>
    %97 = arith.maximumf %95, %96 : vector<8x128xf32>
    %98 = vector.broadcast %62 : vector<8x1xf32> to vector<8x128xf32>
    %99 = vector.broadcast %67 : vector<1x128xf32> to vector<8x128xf32>
    %100 = arith.minimumf %98, %99 : vector<8x128xf32>
    %101 = arith.subf %97, %100 : vector<8x128xf32>
    %102 = vector.broadcast %65 : vector<8x1xf32> to vector<8x128xf32>
    %103 = vector.broadcast %70 : vector<1x128xf32> to vector<8x128xf32>
    %104 = arith.maximumf %102, %103 : vector<8x128xf32>
    %105 = vector.broadcast %63 : vector<8x1xf32> to vector<8x128xf32>
    %106 = vector.broadcast %68 : vector<1x128xf32> to vector<8x128xf32>
    %107 = arith.minimumf %105, %106 : vector<8x128xf32>
    %108 = arith.subf %104, %107 : vector<8x128xf32>
    %109 = arith.mulf %101, %108 : vector<8x128xf32>
    %110 = arith.mulf %94, %109 : vector<8x128xf32>
    %cst_21 = arith.constant 9.99999996E-13 : f32
    %111 = vector.broadcast %cst_21 : f32 to vector<8x128xf32>
    %112 = arith.maximumf %110, %111 : vector<8x128xf32>
    %113 = arith.mulf %90, %109 : vector<8x128xf32>
    %114 = arith.mulf %94, %94 : vector<8x128xf32>
    %115 = arith.addf %113, %114 : vector<8x128xf32>
    %cst_22 = arith.constant 1.000000e+00 : f32
    %116 = vector.broadcast %cst_22 : f32 to vector<8x128xf32>
    %117 = arith.mulf %116, %115 : vector<8x128xf32>
    %118 = tpu.reciprocal %112 {approx = true} : vector<8x128xf32> -> vector<8x128xf32>
    %119 = arith.mulf %117, %118 : vector<8x128xf32>
    %cst_23 = arith.constant 1.000000e+00 : f32
    %120 = vector.broadcast %cst_23 : f32 to vector<8x128xf32>
    %121 = arith.subf %120, %119 : vector<8x128xf32>
    %122 = arith.addf %61, %30 : vector<8x128xf32>
    %123 = arith.addf %122, %121 : vector<8x128xf32>
    %c0_24 = arith.constant 0 : index
    %c0_25 = arith.constant 0 : index
    %c0_26 = arith.constant 0 : index
    %124 = vector.load %arg6[%c0_24, %c0_25, %c0_26] : memref<1x8x128xf32, #tpu.memory_space<vmem>>, vector<1x8x128xf32>
    %125 = vector.shape_cast %124 : vector<1x8x128xf32> to vector<8x128xf32>
    %126 = vector.shape_cast %123 : vector<8x128xf32> to vector<1x8x128xf32>
    tpu.vector_store %arg6[%c0_24, %c0_25, %c0_26], %126 {strides = array<i32>} : memref<1x8x128xf32, #tpu.memory_space<vmem>>, vector<1x8x128xf32>,
    return
  }
  func.func @transform_0(%arg0: i32, %arg1: i32) -> (i32, i32, i32) {
    %c0_i32 = arith.constant 0 : i32
    %c0_i32_0 = arith.constant 0 : i32
    return %arg0, %arg1, %c0_i32 : i32, i32, i32
  }
  func.func @transform_1(%arg0: i32, %arg1: i32) -> (i32, i32, i32) {
    %c0_i32 = arith.constant 0 : i32
    %c0_i32_0 = arith.constant 0 : i32
    %c0_i32_1 = arith.constant 0 : i32
    return %arg0, %c0_i32, %c0_i32_0 : i32, i32, i32
  }
  func.func @transform_2(%arg0: i32, %arg1: i32) -> (i32, i32, i32) {
    %c0_i32 = arith.constant 0 : i32
    %c0_i32_0 = arith.constant 0 : i32
    return %arg0, %arg1, %c0_i32 : i32, i32, i32
  }
  func.func @transform_3(%arg0: i32, %arg1: i32) -> (i32, i32, i32) {
    %c0_i32 = arith.constant 0 : i32
    %c0_i32_0 = arith.constant 0 : i32
    %c0_i32_1 = arith.constant 0 : i32
    return %arg0, %c0_i32, %c0_i32_0 : i32, i32, i32
  }
  func.func @transform_4(%arg0: i32, %arg1: i32) -> (i32, i32, i32) {
    %c0_i32 = arith.constant 0 : i32
    %c0_i32_0 = arith.constant 0 : i32
    return %arg0, %arg1, %c0_i32 : i32, i32, i32
  }
}

</mosaic_0001>

<llo_original>
// kernel: tpu_custom_call.1
$region0: #{tpu_custom_call.1}
  #allocation0 [shape = 'u32[]', space=smem, size = 0x4, offset = 0x4, fixed_abs, tag = 'smem constant byte address 0x4 - core index']
  #allocation1 [shape = 'u32[72,128]{1,0:T(1,128)}', space=vmem, size = 0x9000, scoped, tag = 'internal scratch']
  %s0 = inlined_call_operand.hbm [shape: f32[2,8,16], index: 0, kind: input, shape index: {}]
  %s1 = inlined_call_operand.hbm [shape: f32[2,16,128], index: 1, kind: input, shape index: {}]
  %s2 = inlined_call_operand.hbm [shape: f32[2,8,16], index: 2, kind: input, shape index: {}]
  %s3 = inlined_call_operand.hbm [shape: f32[2,16,128], index: 3, kind: input, shape index: {}]
  %s4 = inlined_call_operand.hbm [shape: f32[2,8,128], index: 4, kind: output, shape index: {}]
  %s5 = sld [smem:[#allocation0]]
  $region65: #{tpu_custom_call.1} parent=0
    _
  %s7 = ssub.s32 1, %s5
  %s8 = scalar_select 0, %s7, %s5
  $region1: #{tpu_custom_call.1} parent=0
    #allocation2 [shape = 'u8[8192]{0}', space=vmem, size = 0x2000, scoped, tag = 'input window, operand 0']
    #allocation3 [shape = 's32[2]{0}', space=sflag, size = 0x8, scoped, tag = 'scoped memory for tpu_custom_call.1']
    #allocation4 [shape = 's32[2]{0}', space=sflag, size = 0x8, scoped, tag = 'scoped memory for tpu_custom_call.1']
    #allocation5 [shape = 'u8[16384]{0}', space=vmem, size = 0x4000, scoped, tag = 'input window, operand 1']
    #allocation6 [shape = 's32[2]{0}', space=sflag, size = 0x8, scoped, tag = 'scoped memory for tpu_custom_call.1']
    #allocation7 [shape = 'u8[8192]{0}', space=vmem, size = 0x2000, scoped, tag = 'input window, operand 2']
    #allocation8 [shape = 'u8[16384]{0}', space=vmem, size = 0x4000, scoped, tag = 'input window, operand 3']
    #allocation9 [shape = 's32[2]{0}', space=sflag, size = 0x8, scoped, tag = 'scoped memory for tpu_custom_call.1']
    #allocation10 [shape = 'u8[8192]{0}', space=vmem, size = 0x2000, scoped, tag = 'output window, operand 0']
    %9 = vsyncpa [#allocation3], 0
    %s10 = scalar_lea.sflag [#allocation3], 1
    %11 = vsyncpa %s10, 0
    %12 = vsyncpa [#allocation6], 0
    %s13 = scalar_lea.sflag [#allocation6], 1
    %14 = vsyncpa %s13, 0
    %15 = vsyncpa [#allocation9], 0
    %s16 = scalar_lea.sflag [#allocation9], 1
    %17 = vsyncpa %s16, 0
    %18 = vsyncpa [#allocation4], 0
    %s19 = scalar_lea.sflag [#allocation4], 1
    %20 = vsyncpa %s19, 0
    loop: start=0, step=1, limit=4
    $region2: #{tpu_custom_call.1} parent=1 // loop_pre_header
      _
    $region3: #{tpu_custom_call.1} parent=1 // loop_header
      %s22 = sphi 0, %s26
      %p23 = scmp.ge.s32.totalorder %s22, 4
      %s29 = sphi 0, %s41
      %s30 = sphi 0, %s37
      %s31 = sphi 0, %s29
      %s32 = sphi 0, %s30
      %s33 = sphi 0, %s31
      %s34 = sphi 0, %s32
      %s46 = sphi 0, %s48
      %s49 = sphi 0, %s46
      %s50 = sphi 0, %s49
      %s66 = sphi 0, %s50
      %s72 = sphi 0, %s74
      %s75 = sphi 0, %s72
      %s76 = sphi 0, %s75
      %s92 = sphi 0, %s76
      %s100 = sphi 0, %s102
      %s103 = sphi 0, %s100
      %s104 = sphi 0, %s103
      %s120 = sphi 0, %s104
      %s126 = sphi 0, %s128
      %s129 = sphi 0, %s126
      %s130 = sphi 0, %s129
      %s146 = sphi 0, %s130
      %s154 = sphi 0, %s156
      %s157 = sphi 0, %s154
      %s158 = sphi 0, %s157
      %s174 = sphi 0, %s158
    $region4: #{tpu_custom_call.1} parent=1 // loop_header_branch
      %25 = sbr.rel (%p23) target = $region8
    $region5: #{tpu_custom_call.1} parent=1 // loop_body
      %s27 = ssub.s32 %s22, 1
      %s28 = ssub.s32 %s22, 2
      %s35 = sadd.s32 1, %s30
      %p36 = scmp.ge.s32.totalorder %s35, 1
      %s37 = scalar_select %p36, 0, %s35
      %s38 = sadd.s32 1, %s29
      %s39 = scalar_select %p36, %s38, %s29
      %p40 = scmp.ge.s32.totalorder %s39, 2
      %s41 = scalar_select %p40, 0, %s39
      %s42 = ssub.s32 %s29, %s41
      %s43 = ssub.s32 %s30, %s37
      %s44 = sor.u32 %s42, %s43
      %p45 = scmp.eq.s32.totalorder %s44, 0
      %s47 = sadd.s32 %s46, 1
      %s48 = scalar_select %p45, %s46, %s47
      %p51 = pneg %p45
      %p52 = scmp.eq.s32.totalorder %s22, 1
      %p53 = por %p51, %p52
      %p54 = scmp.ne.s32.totalorder %s46, %s49
      %p55 = scmp.eq.s32.totalorder %s22, 0
      %p56 = por %p54, %p55
      %p57 = scmp.ne.s32.totalorder %s46, %s49
      %p58 = scmp.eq.s32.totalorder %s27, 1
      %p59 = por %p57, %p58
      %p60 = scmp.ne.s32.totalorder %s49, %s50
      %p61 = scmp.eq.s32.totalorder %s27, 0
      %p62 = por %p60, %p61
      %p63 = scmp.ne.s32.totalorder %s49, %s50
      %p64 = scmp.eq.s32.totalorder %s28, 1
      %p65 = por %p63, %p64
      %p67 = scmp.ne.s32.totalorder %s50, %s66
      %p68 = scmp.eq.s32.totalorder %s28, 0
      %p69 = por %p67, %p68
      %s70 = ssub.s32 %s29, %s41
      %p71 = scmp.eq.s32.totalorder %s70, 0
      %s73 = sadd.s32 %s72, 1
      %s74 = scalar_select %p71, %s72, %s73
      %p77 = pneg %p71
      %p78 = scmp.eq.s32.totalorder %s22, 1
      %p79 = por %p77, %p78
      %p80 = scmp.ne.s32.totalorder %s72, %s75
      %p81 = scmp.eq.s32.totalorder %s22, 0
      %p82 = por %p80, %p81
      %p83 = scmp.ne.s32.totalorder %s72, %s75
      %p84 = scmp.eq.s32.totalorder %s27, 1
      %p85 = por %p83, %p84
      %p86 = scmp.ne.s32.totalorder %s75, %s76
      %p87 = scmp.eq.s32.totalorder %s27, 0
      %p88 = por %p86, %p87
      %p89 = scmp.ne.s32.totalorder %s75, %s76
      %p90 = scmp.eq.s32.totalorder %s28, 1
      %p91 = por %p89, %p90
      %p93 = scmp.ne.s32.totalorder %s76, %s92
      %p94 = scmp.eq.s32.totalorder %s28, 0
      %p95 = por %p93, %p94
      %s96 = ssub.s32 %s29, %s41
      %s97 = ssub.s32 %s30, %s37
      %s98 = sor.u32 %s96, %s97
      %p99 = scmp.eq.s32.totalorder %s98, 0
      %s101 = sadd.s32 %s100, 1
      %s102 = scalar_select %p99, %s100, %s101
      %p105 = pneg %p99
      %p106 = scmp.eq.s32.totalorder %s22, 1
      %p107 = por %p105, %p106
      %p108 = scmp.ne.s32.totalorder %s100, %s103
      %p109 = scmp.eq.s32.totalorder %s22, 0
      %p110 = por %p108, %p109
      %p111 = scmp.ne.s32.totalorder %s100, %s103
      %p112 = scmp.eq.s32.totalorder %s27, 1
      %p113 = por %p111, %p112
      %p114 = scmp.ne.s32.totalorder %s103, %s104
      %p115 = scmp.eq.s32.totalorder %s27, 0
      %p116 = por %p114, %p115
      %p117 = scmp.ne.s32.totalorder %s103, %s104
      %p118 = scmp.eq.s32.totalorder %s28, 1
      %p119 = por %p117, %p118
      %p121 = scmp.ne.s32.totalorder %s104, %s120
      %p122 = scmp.eq.s32.totalorder %s28, 0
      %p123 = por %p121, %p122
      %s124 = ssub.s32 %s29, %s41
      %p125 = scmp.eq.s32.totalorder %s124, 0
      %s127 = sadd.s32 %s126, 1
      %s128 = scalar_select %p125, %s126, %s127
      %p131 = pneg %p125
      %p132 = scmp.eq.s32.totalorder %s22, 1
      %p133 = por %p131, %p132
      %p134 = scmp.ne.s32.totalorder %s126, %s129
      %p135 = scmp.eq.s32.totalorder %s22, 0
      %p136 = por %p134, %p135
      %p137 = scmp.ne.s32.totalorder %s126, %s129
      %p138 = scmp.eq.s32.totalorder %s27, 1
      %p139 = por %p137, %p138
      %p140 = scmp.ne.s32.totalorder %s129, %s130
      %p141 = scmp.eq.s32.totalorder %s27, 0
      %p142 = por %p140, %p141
      %p143 = scmp.ne.s32.totalorder %s129, %s130
      %p144 = scmp.eq.s32.totalorder %s28, 1
      %p145 = por %p143, %p144
      %p147 = scmp.ne.s32.totalorder %s130, %s146
      %p148 = scmp.eq.s32.totalorder %s28, 0
      %p149 = por %p147, %p148
      %s150 = ssub.s32 %s29, %s41
      %s151 = ssub.s32 %s30, %s37
      %s152 = sor.u32 %s150, %s151
      %p153 = scmp.eq.s32.totalorder %s152, 0
      %s155 = sadd.s32 %s154, 1
      %s156 = scalar_select %p153, %s154, %s155
      %p159 = pneg %p153
      %p160 = scmp.eq.s32.totalorder %s22, 1
      %p161 = por %p159, %p160
      %p162 = scmp.ne.s32.totalorder %s154, %s157
      %p163 = scmp.eq.s32.totalorder %s22, 0
      %p164 = por %p162, %p163
      %p165 = scmp.ne.s32.totalorder %s154, %s157
      %p166 = scmp.eq.s32.totalorder %s27, 1
      %p167 = por %p165, %p166
      %p168 = scmp.ne.s32.totalorder %s157, %s158
      %p169 = scmp.eq.s32.totalorder %s27, 0
      %p170 = por %p168, %p169
      %p171 = scmp.ne.s32.totalorder %s157, %s158
      %p172 = scmp.eq.s32.totalorder %s28, 1
      %p173 = por %p171, %p172
      %p175 = scmp.ne.s32.totalorder %s158, %s174
      %p176 = scmp.eq.s32.totalorder %s28, 0
      %p177 = por %p175, %p176
      %p178 = scmp.le.s32.totalorder 1, %s22
      %p179 = scmp.lt.s32.totalorder %s22, 3
      %p180 = pnand %p178, %p179
      %p181 = pneg %p180
      // Predicated region
      $region9: #{tpu_custom_call.1} parent=5 // pred_check
        _
      $region10: #{tpu_custom_call.1} parent=5 // pred_check_branch
        %183 = sbr.rel (%p180) target = $region12
      $region11: #{tpu_custom_call.1} parent=5 // pred_region
        %s184 = ssub.s32 %s22, 1
      $region12: #{tpu_custom_call.1} parent=5 // pred_fallthru
        _
      %p185 = scmp.lt.s32.totalorder %s22, 2
      // Predicated region
      $region13: #{tpu_custom_call.1} parent=5 // pred_check
        %p186 = pneg %p185
      $region14: #{tpu_custom_call.1} parent=5 // pred_check_branch
        %188 = sbr.rel (%p186) target = $region16
      $region15: #{tpu_custom_call.1} parent=5 // pred_region
        // Predicated region
        $region17: #{tpu_custom_call.1} parent=15 // pred_check
          %p189 = pneg %p56
        $region18: #{tpu_custom_call.1} parent=15 // pred_check_branch
          %191 = sbr.rel (%p189) target = $region20
        $region19: #{tpu_custom_call.1} parent=15 // pred_region
          %s192 = sand.u32 %s46, 1
          %s193 = scalar_lea.sflag [#allocation3], %s192
          %s194 = sand.u32 %s46, 1
          %s195 = smul.addr %s194, 8
          %s196 = scalar_lea.vmem [#allocation2], %s195
          %198 = vsyncadd %s193, 0
          %s199 = sadd.s32 %s30, %s29
          %s200 = smul.addr %s199, 8
          %s201 = scalar_lea.hbm %s0, %s200
          %s203 = sshll.u32 %s201, 4
          %s204 = int_to_ptr.hbm [resolvable:$true] %s203
          %s205 = sshll.u32 %s196, 4
          %s206 = int_to_ptr.vmem [resolvable:$true] %s205
          %208 = dma.hbm_to_vmem [thread:$0]  %s204, 128, %s206, %s193
        $region20: #{tpu_custom_call.1} parent=15 // pred_fallthru
          _
        // Predicated region
        $region21: #{tpu_custom_call.1} parent=15 // pred_check
          %p209 = pneg %p82
        $region22: #{tpu_custom_call.1} parent=15 // pred_check_branch
          %211 = sbr.rel (%p209) target = $region24
        $region23: #{tpu_custom_call.1} parent=15 // pred_region
          %s212 = sand.u32 %s22, 1
          %s213 = scalar_lea.sflag [#allocation6], %s212
          %s214 = sand.u32 %s72, 1
          %s215 = smul.addr %s214, 16
          %s216 = scalar_lea.vmem [#allocation5], %s215
          %218 = vsyncadd %s213, 0
          %s219 = smul.addr %s29, 2
          %s220 = smul.addr %s219, 8
          %s221 = scalar_lea.hbm %s1, %s220
          %s222 = sshll.u32 %s221, 4
          %s223 = int_to_ptr.hbm [resolvable:$true] %s222
          %s224 = sshll.u32 %s216, 4
          %s225 = int_to_ptr.vmem [resolvable:$true] %s224
          %230 = dma.hbm_to_vmem [thread:$0]  %s223, 256, %s225, %s213, 128, 128, 8
        $region24: #{tpu_custom_call.1} parent=15 // pred_fallthru
          _
        // Predicated region
        $region25: #{tpu_custom_call.1} parent=15 // pred_check
          %p231 = pneg %p110
        $region26: #{tpu_custom_call.1} parent=15 // pred_check_branch
          %233 = sbr.rel (%p231) target = $region28
        $region27: #{tpu_custom_call.1} parent=15 // pred_region
          %s234 = sand.u32 %s22, 1
          %s235 = scalar_lea.sflag [#allocation6], %s234
          %s236 = sand.u32 %s100, 1
          %s237 = smul.addr %s236, 8
          %s238 = scalar_lea.vmem [#allocation7], %s237
          %240 = vsyncadd %s235, 0
          %s241 = sadd.s32 %s30, %s29
          %s242 = smul.addr %s241, 8
          %s243 = scalar_lea.hbm %s2, %s242
          %s245 = sshll.u32 %s243, 4
          %s246 = int_to_ptr.hbm [resolvable:$true] %s245
          %s247 = sshll.u32 %s238, 4
          %s248 = int_to_ptr.vmem [resolvable:$true] %s247
          %250 = dma.hbm_to_vmem [thread:$0]  %s246, 128, %s248, %s235
        $region28: #{tpu_custom_call.1} parent=15 // pred_fallthru
          _
        // Predicated region
        $region29: #{tpu_custom_call.1} parent=15 // pred_check
          %p251 = pneg %p136
        $region30: #{tpu_custom_call.1} parent=15 // pred_check_branch
          %253 = sbr.rel (%p251) target = $region32
        $region31: #{tpu_custom_call.1} parent=15 // pred_region
          %s254 = sand.u32 %s126, 1
          %s255 = scalar_lea.sflag [#allocation9], %s254
          %s256 = sand.u32 %s126, 1
          %s257 = smul.addr %s256, 16
          %s258 = scalar_lea.vmem [#allocation8], %s257
          %260 = vsyncadd %s255, 0
          %s261 = smul.addr %s29, 2
          %s262 = smul.addr %s261, 8
          %s263 = scalar_lea.hbm %s3, %s262
          %s264 = sshll.u32 %s263, 4
          %s265 = int_to_ptr.hbm [resolvable:$true] %s264
          %s266 = sshll.u32 %s258, 4
          %s267 = int_to_ptr.vmem [resolvable:$true] %s266
          %272 = dma.hbm_to_vmem [thread:$0]  %s265, 256, %s267, %s255, 128, 128, 8
        $region32: #{tpu_custom_call.1} parent=15 // pred_fallthru
          _
      $region16: #{tpu_custom_call.1} parent=5 // pred_fallthru
        _
      %p273 = scmp.le.s32.totalorder 1, %s22
      %p274 = scmp.lt.s32.totalorder %s22, 3
      %p275 = pnand %p273, %p274
      %p276 = pneg %p275
      // Predicated region
      $region33: #{tpu_custom_call.1} parent=5 // pred_check
        _
      $region34: #{tpu_custom_call.1} parent=5 // pred_check_branch
        %278 = sbr.rel (%p275) target = $region36
      $region35: #{tpu_custom_call.1} parent=5 // pred_region
        %s279 = ssub.s32 %s22, 1
        %s280 = sand.u32 %s49, 1
        %s281 = scalar_lea.sflag [#allocation3], %s280
        %s282 = sand.u32 %s49, 1
        %s283 = smul.addr %s282, 8
        %s284 = scalar_lea.vmem [#allocation2], %s283
        // Predicated region
        $region37: #{tpu_custom_call.1} parent=35 // pred_check
          %p285 = pneg %p62
        $region38: #{tpu_custom_call.1} parent=35 // pred_check_branch
          %287 = sbr.rel (%p285) target = $region40
        $region39: #{tpu_custom_call.1} parent=35 // pred_region
          %289 = dma.done %s281, 128
        $region40: #{tpu_custom_call.1} parent=35 // pred_fallthru
          _
        %s290 = sand.u32 %s27, 1
        %s291 = scalar_lea.sflag [#allocation6], %s290
        %s292 = sand.u32 %s75, 1
        %s293 = smul.addr %s292, 16
        %s294 = scalar_lea.vmem [#allocation5], %s293
        // Predicated region
        $region41: #{tpu_custom_call.1} parent=35 // pred_check
          %p295 = pneg %p88
        $region42: #{tpu_custom_call.1} parent=35 // pred_check_branch
          %297 = sbr.rel (%p295) target = $region44
        $region43: #{tpu_custom_call.1} parent=35 // pred_region
          %299 = dma.done %s291, 256
        $region44: #{tpu_custom_call.1} parent=35 // pred_fallthru
          _
        %s300 = sand.u32 %s27, 1
        %s301 = scalar_lea.sflag [#allocation6], %s300
        %s302 = sand.u32 %s103, 1
        %s303 = smul.addr %s302, 8
        %s304 = scalar_lea.vmem [#allocation7], %s303
        // Predicated region
        $region45: #{tpu_custom_call.1} parent=35 // pred_check
          %p305 = pneg %p116
        $region46: #{tpu_custom_call.1} parent=35 // pred_check_branch
          %307 = sbr.rel (%p305) target = $region48
        $region47: #{tpu_custom_call.1} parent=35 // pred_region
          %309 = dma.done %s301, 128
        $region48: #{tpu_custom_call.1} parent=35 // pred_fallthru
          _
        %s310 = sand.u32 %s129, 1
        %s311 = scalar_lea.sflag [#allocation9], %s310
        %s312 = sand.u32 %s129, 1
        %s313 = smul.addr %s312, 16
        %s314 = scalar_lea.vmem [#allocation8], %s313
        // Predicated region
        $region49: #{tpu_custom_call.1} parent=35 // pred_check
          %p315 = pneg %p142
        $region50: #{tpu_custom_call.1} parent=35 // pred_check_branch
          %317 = sbr.rel (%p315) target = $region52
        $region51: #{tpu_custom_call.1} parent=35 // pred_region
          %319 = dma.done %s311, 256
        $region52: #{tpu_custom_call.1} parent=35 // pred_fallthru
          _
        %s320 = sand.u32 %s49, 1
        %s321 = scalar_lea.sflag [#allocation3], %s320
        %s322 = sand.u32 %s49, 1
        %s323 = smul.addr %s322, 8
        %s324 = scalar_lea.vmem [#allocation2], %s323
        %p325 = pneg %p62
        %p326 = pneg %p59
        %s327 = sand.u32 %s27, 1
        %s328 = scalar_lea.sflag [#allocation6], %s327
        %s329 = sand.u32 %s75, 1
        %s330 = smul.addr %s329, 16
        %s331 = scalar_lea.vmem [#allocation5], %s330
        %p332 = pneg %p88
        %p333 = pneg %p85
        %s334 = sand.u32 %s27, 1
        %s335 = scalar_lea.sflag [#allocation6], %s334
        %s336 = sand.u32 %s103, 1
        %s337 = smul.addr %s336, 8
        %s338 = scalar_lea.vmem [#allocation7], %s337
        %p339 = pneg %p116
        %p340 = pneg %p113
        %s341 = sand.u32 %s129, 1
        %s342 = scalar_lea.sflag [#allocation9], %s341
        %s343 = sand.u32 %s129, 1
        %s344 = smul.addr %s343, 16
        %s345 = scalar_lea.vmem [#allocation8], %s344
        %p346 = pneg %p142
        %p347 = pneg %p139
        %p348 = pneg %p170
        %p349 = pneg %p167
        %s350 = sand.u32 %s157, 1
        %s351 = scalar_lea.sflag [#allocation4], %s350
        %s352 = sand.u32 %s157, 1
        %s353 = smul.addr %s352, 8
        %s354 = scalar_lea.vmem [#allocation10], %s353
        %v355 = vld [vmem:[%s284] sm:$0xff]
        %v356 = vxor.u32 %v355, 2147483648
        %v357 = vmul.f32 %v356, 1.442695
        %v358 = vpow.pop %v357
        %v359 = vadd.f32 %v358, 1.0
        %v360 = vrcp.pop %v359
        %v361 = vmul.f32 %v359, %v360
        %v362 = vsub.f32 1.0, %v361
        %v363 = vmul.f32 %v360, %v362
        %v364 = vadd.f32 %v360, %v363
        %vm365 = vweird.f32 %v359
        %vm366 = vweird.f32 %v360
        %vm367 = vmor %vm365, %vm366
        %v368 = vsel %vm367, %v360, %v364
        %v369 = vand.u32 2147483647, %v359
        %vm370 = vcmp.eq.f32.partialorder %v369, 8.507059e+37
        %v371 = vand.u32 %v359, 2147483648
        %v372 = vor.u32 1.1754944e-38, %v371
        %v373 = vsel %vm370, %v372, %v368
        %v374 = vmul.f32 1.0, %v373
        %v375 = vsub.f32 1.0, %v374
        %v376 = vmul.f32 %v374, %v374
        %v377 = vmul.f32 %v376, 0.75
        %v378 = vadd.f32 %v375, 1e-08
        %v379 = vlog2.pop %v378
        %v380 = vmul.f32 %v379, 0.6931472
        %v381 = vsub.f32 0.0, %v380
        %v382 = vmul.f32 %v377, %v381
        %v383 = vmul.f32 %v375, %v375
        %v384 = vmul.f32 %v383, 0.25
        %v385 = vadd.f32 %v374, 1e-08
        %v386 = vlog2.pop %v385
        %v387 = vmul.f32 %v386, 0.6931472
        %v388 = vsub.f32 0.0, %v387
        %v389 = vmul.f32 %v384, %v388
        %v390 = vsub.f32 %v389, %v382
        %v391 = vld [vmem:[%s294] sm:$0xff]
        %v392 = vld [vmem:[%s294 + $0x8] sm:$0xff]
        %vm393 = vcmask 130048
        %v395 = vsel %vm393, %v390, 0
        %397 = vmatpush.msra.mxu0 0.0
        %398 = vmatpush.msra.mxu0 0.0
        %399 = vmatpush.msra.mxu0 0.0
        %400 = vmatpush.msra.mxu0 0.0
        %401 = vmatpush.msra.mxu0 0.0
        %402 = vmatpush.msra.mxu0 0.0
        %403 = vmatpush.msra.mxu0 0.0
        %404 = vmatpush.msra.mxu0 0.0
        %405 = vmatpush.msra.mxu0 0.0
        %406 = vmatpush.msra.mxu0 0.0
        %407 = vmatpush.msra.mxu0 0.0
        %408 = vmatpush.msra.mxu0 0.0
        %409 = vmatpush.msra.mxu0 0.0
        %410 = vmatpush.msra.mxu0 0.0
        %411 = vmatpush.msra.mxu0 %v392
        %412 = vmatpush.msra.mxu0 %v391
        %413 = vmatmul.f32.gmra.mxu0 %v395
        %v414 = vpop.f32.mrf.mxu0
        %v415 = vadd.f32 0.0, %v414
        %416 = vdwg.mxu0
        %v417 = vld [vmem:[%s304] sm:$0xff]
        %v418 = vld [vmem:[%s314] sm:$0xff]
        %v419 = vld [vmem:[%s314 + $0x8] sm:$0xff]
        %421 = vset.pattern.permute.xlu0 0
        %422 = vperm.xlu0 %421, %v417
        %v423 = vpop.permute.xlu0 %422
        %v425 = vperm.slane %v418, 0
        %v426 = vsub.f32 %v423, %v425
        %v427 = vand.u32 2147483647, %v426
        %428 = vset.pattern.permute.xlu0 1
        %429 = vperm.xlu0 %428, %v417
        %v430 = vpop.permute.xlu0 %429
        %v432 = vperm.slane %v418, 1
        %v433 = vsub.f32 %v430, %v432
        %v434 = vand.u32 2147483647, %v433
        %v435 = vadd.f32 %v427, %v434
        %436 = vset.pattern.permute.xlu0 2
        %437 = vperm.xlu0 %436, %v417
        %v438 = vpop.permute.xlu0 %437
        %v440 = vperm.slane %v418, 2
        %v441 = vsub.f32 %v438, %v440
        %v442 = vand.u32 2147483647, %v441
        %v443 = vadd.f32 %v435, %v442
        %444 = vset.pattern.permute.xlu0 3
        %445 = vperm.xlu0 %444, %v417
        %v446 = vpop.permute.xlu0 %445
        %v448 = vperm.slane %v418, 3
        %v449 = vsub.f32 %v446, %v448
        %v450 = vand.u32 2147483647, %v449
        %v451 = vadd.f32 %v443, %v450
        %452 = vset.pattern.permute.xlu0 6
        %453 = vperm.xlu0 %452, %v417
        %v454 = vpop.permute.xlu0 %453
        %v456 = vperm.slane %v418, 6
        %v457 = vmin.f32 %v454, %v456
        %458 = vset.pattern.permute.xlu0 4
        %459 = vperm.xlu0 %458, %v417
        %v460 = vpop.permute.xlu0 %459
        %v462 = vperm.slane %v418, 4
        %v463 = vmax.f32 %v460, %v462
        %v464 = vsub.f32 %v457, %v463
        %v465 = vmax.f32 %v464, 0.0
        %466 = vset.pattern.permute.xlu0 7
        %467 = vperm.xlu0 %466, %v417
        %v468 = vpop.permute.xlu0 %467
        %v470 = vperm.slane %v418, 7
        %v471 = vmin.f32 %v468, %v470
        %472 = vset.pattern.permute.xlu0 5
        %473 = vperm.xlu0 %472, %v417
        %v474 = vpop.permute.xlu0 %473
        %v476 = vperm.slane %v418, 5
        %v477 = vmax.f32 %v474, %v476
        %v478 = vsub.f32 %v471, %v477
        %v479 = vmax.f32 %v478, 0.0
        %v480 = vmul.f32 %v465, %v479
        %481 = vset.pattern.permute.xlu0 8
        %482 = vperm.xlu0 %481, %v417
        %v483 = vpop.permute.xlu0 %482
        %v485 = vperm.slane %v419, 0
        %v486 = vadd.f32 %v483, %v485
        %v487 = vsub.f32 %v486, %v480
        %v488 = vmax.f32 %v454, %v456
        %v489 = vmin.f32 %v460, %v462
        %v490 = vsub.f32 %v488, %v489
        %v491 = vmax.f32 %v468, %v470
        %v492 = vmin.f32 %v474, %v476
        %v493 = vsub.f32 %v491, %v492
        %v494 = vmul.f32 %v490, %v493
        %v495 = vmul.f32 %v487, %v494
        %v496 = vmax.f32 %v495, 1e-12
        %v497 = vmul.f32 %v480, %v494
        %v498 = vmul.f32 %v487, %v487
        %v499 = vadd.f32 %v497, %v498
        %v500 = vrcp.pop %v496
        %v501 = vmul.f32 %v499, %v500
        %v502 = vsub.f32 1.0, %v501
        %v503 = vadd.f32 %v451, %v415
        %v504 = vadd.f32 %v503, %v502
        %505 = vst [vmem:[%s354] sm:$0xff] %v504
        %s506 = sand.u32 %s157, 1
        %s507 = scalar_lea.sflag [#allocation4], %s506
        %s508 = sand.u32 %s157, 1
        %s509 = smul.addr %s508, 8
        %s510 = scalar_lea.vmem [#allocation10], %s509
        // Predicated region
        $region53: #{tpu_custom_call.1} parent=35 // pred_check
          %p511 = pneg %p167
        $region54: #{tpu_custom_call.1} parent=35 // pred_check_branch
          %513 = sbr.rel (%p511) target = $region56
        $region55: #{tpu_custom_call.1} parent=35 // pred_region
          %515 = vsyncadd %s507, 0
          %s516 = sadd.s32 %s32, %s31
          %s517 = smul.addr %s516, 8
          %s518 = scalar_lea.hbm %s4, %s517
          %s520 = sshll.u32 %s510, 4
          %s521 = int_to_ptr.vmem [resolvable:$true] %s520
          %s522 = sshll.u32 %s518, 4
          %s523 = int_to_ptr.hbm [resolvable:$true] %s522
          %525 = dma.vmem_to_hbm [thread:$0]  %s521, 128, %s523, %s507
        $region56: #{tpu_custom_call.1} parent=35 // pred_fallthru
          _
      $region36: #{tpu_custom_call.1} parent=5 // pred_fallthru
        _
      %p526 = scmp.le.s32.totalorder 2, %s22
      // Predicated region
      $region57: #{tpu_custom_call.1} parent=5 // pred_check
        %p527 = pneg %p526
      $region58: #{tpu_custom_call.1} parent=5 // pred_check_branch
        %529 = sbr.rel (%p527) target = $region60
      $region59: #{tpu_custom_call.1} parent=5 // pred_region
        %s530 = ssub.s32 %s22, 2
        // Predicated region
        $region61: #{tpu_custom_call.1} parent=59 // pred_check
          %p531 = pneg %p173
        $region62: #{tpu_custom_call.1} parent=59 // pred_check_branch
          %533 = sbr.rel (%p531) target = $region64
        $region63: #{tpu_custom_call.1} parent=59 // pred_region
          %s534 = sand.u32 %s158, 1
          %s535 = scalar_lea.sflag [#allocation4], %s534
          %s536 = sand.u32 %s158, 1
          %s537 = smul.addr %s536, 8
          %s538 = scalar_lea.vmem [#allocation10], %s537
          %540 = dma.done %s535, 128
        $region64: #{tpu_custom_call.1} parent=59 // pred_fallthru
          _
      $region60: #{tpu_custom_call.1} parent=5 // pred_fallthru
        _
    $region6: #{tpu_custom_call.1} parent=1 // loop_footer
      %s26 = sadd.s32 1, %s22
    $region7: #{tpu_custom_call.1} parent=1 // loop_footer_branch
      %21 = sbr.rel target = $region3
    $region8: #{tpu_custom_call.1} parent=1 // loop_exit
      _
    %541 = vsyncpa [#allocation3], 1
    %s542 = scalar_lea.sflag [#allocation3], 1
    %543 = vsyncpa %s542, 1
    %544 = vsyncpa [#allocation6], 1
    %s545 = scalar_lea.sflag [#allocation6], 1
    %546 = vsyncpa %s545, 1
    %547 = vsyncpa [#allocation9], 1
    %s548 = scalar_lea.sflag [#allocation9], 1
    %549 = vsyncpa %s548, 1
    %550 = vsyncpa [#allocation4], 1
    %s551 = scalar_lea.sflag [#allocation4], 1
    %552 = vsyncpa %s551, 1

</llo_original>
